<compile_context>
chip_gen: v5e
topology: v5e:2x2
jax: 0.10.0
libtpu: 0.0.40
codegen_flags: <defaults>
</compile_context>

<pallas_src>
import jax
import jax.numpy as jnp
from jax.experimental import pallas as pl
from jax.experimental.pallas import tpu as pltpu

LANE = 128
VMEM_LIMIT = 48 * 1024 * 1024   # above v5e 16 MiB default, within v7x 64 MiB physical


def _round_up(v, m):
    return ((v + m - 1) // m) * m


def _pad2d(a, rows, cols):
    return jnp.pad(a, ((0, rows - a.shape[0]), (0, cols - a.shape[1])))


def _choose_tile(n):
    """TM == TK. Prefer 512 (amortizes ~0.35us/step overhead, >= 85% of HBM
    roofline) but keep >= 2 row tiles at realistic sizes for v7x megacore."""
    if n >= 1024:
        return 512
    if n >= 512:
        return 256
    return 128


# --------------------------------------------------------------------------- kernels
def _sage_layer_kernel(a_ref, xk_ref, xi_ref, dinv_ref, wl_ref, wr_ref, b_ref,
                       o_ref, acc_ref, self_ref):
    """o = relu( (1/deg) * (A_bin @ x) @ Wl  +  x_self @ Wr + b )."""
    k = pl.program_id(1)

    @pl.when(k == 0)
    def _():
        acc_ref[...] = jnp.zeros_like(acc_ref)
        # Self-term at k==0: spreads MXU work across the k loop instead of
        # stacking every epilogue matmul on the last step.
        self_ref[...] = (jnp.dot(xi_ref[...], wr_ref[...],
                                 preferred_element_type=jnp.float32)
                         + b_ref[...])

    # Binary adjacency @ features: bf16 MXU inputs, f32 accumulation.
    acc_ref[...] += jnp.dot(a_ref[...], xk_ref[...],
                            preferred_element_type=jnp.float32)

    @pl.when(k == pl.num_programs(1) - 1)
    def _():
        # Deferred mean normalization in f32 (exact 0/1 A + exact f32 1/deg).
        agg = (acc_ref[...] * dinv_ref[...]).astype(jnp.bfloat16)
        h = (jnp.dot(agg, wl_ref[...], preferred_element_type=jnp.float32)
             + self_ref[...])
        o_ref[...] = jnp.maximum(h, 0.0).astype(o_ref.dtype)


def _sage_classifier_kernel(a_ref, hk_ref, hi_ref, dinv_ref, wl_ref, wr_ref,
                            b_ref, wc_ref, bc_ref, o_ref, acc_ref, self_ref):
    """Second SAGEConv + ReLU fused with the final Linear (lane-dense output)."""
    k = pl.program_id(1)

    @pl.when(k == 0)
    def _():
        acc_ref[...] = jnp.zeros_like(acc_ref)
        self_ref[...] = (jnp.dot(hi_ref[...], wr_ref[...],
                                 preferred_element_type=jnp.float32)
                         + b_ref[...])

    acc_ref[...] += jnp.dot(a_ref[...], hk_ref[...],
                            preferred_element_type=jnp.float32)

    @pl.when(k == pl.num_programs(1) - 1)
    def _():
        agg = (acc_ref[...] * dinv_ref[...]).astype(jnp.bfloat16)
        h = (jnp.dot(agg, wl_ref[...], preferred_element_type=jnp.float32)
             + self_ref[...])
        h = jnp.maximum(h, 0.0).astype(jnp.bfloat16)
        o_ref[...] = (jnp.dot(h, wc_ref[...], preferred_element_type=jnp.float32)
                      + bc_ref[...])


# --------------------------------------------------------------------------- callers
def _const_map(i, k):
    return (0, 0)


def _sage_layer_call(a_pad, x_pad, dinv, wl, wr, b, out_dim, tm, tk):
    n_pad = a_pad.shape[0]
    f_pad = x_pad.shape[1]
    grid = (n_pad // tm, n_pad // tk)
    return pl.pallas_call(
        _sage_layer_kernel,
        out_shape=jax.ShapeDtypeStruct((n_pad, out_dim), jnp.bfloat16),
        grid_spec=pltpu.PrefetchScalarGridSpec(
            num_scalar_prefetch=0,
            grid=grid,
            in_specs=[
                pl.BlockSpec((tm, tk), lambda i, k: (i, k)),      # binary A tile
                pl.BlockSpec((tk, f_pad), lambda i, k: (k, 0)),   # source-node features
                pl.BlockSpec((tm, f_pad), lambda i, k: (i, 0)),   # self-node features
                pl.BlockSpec((tm, 1), lambda i, k: (i, 0)),       # f32 1/deg per dst row
                pl.BlockSpec(wl.shape, _const_map),               # resident weights
                pl.BlockSpec(wr.shape, _const_map),
                pl.BlockSpec(b.shape, _const_map),
            ],
            out_specs=pl.BlockSpec((tm, out_dim), lambda i, k: (i, 0)),
            scratch_shapes=[pltpu.VMEM((tm, f_pad), jnp.float32),   # aggregation acc
                            pltpu.VMEM((tm, out_dim), jnp.float32)],  # self-term
        ),
        compiler_params=pltpu.CompilerParams(
            dimension_semantics=("parallel", "arbitrary"),
            vmem_limit_bytes=VMEM_LIMIT),
    )(a_pad, x_pad, x_pad, dinv, wl, wr, b)


def _sage_classifier_call(a_pad, h_pad, dinv, wl, wr, b, wc, bc, out_dim, tm, tk):
    n_pad = a_pad.shape[0]
    f_pad = h_pad.shape[1]
    h2_dim = wl.shape[1]
    grid = (n_pad // tm, n_pad // tk)
    return pl.pallas_call(
        _sage_classifier_kernel,
        out_shape=jax.ShapeDtypeStruct((n_pad, out_dim), jnp.float32),
        grid_spec=pltpu.PrefetchScalarGridSpec(
            num_scalar_prefetch=0,
            grid=grid,
            in_specs=[
                pl.BlockSpec((tm, tk), lambda i, k: (i, k)),      # binary A tile
                pl.BlockSpec((tk, f_pad), lambda i, k: (k, 0)),   # source-node h1
                pl.BlockSpec((tm, f_pad), lambda i, k: (i, 0)),   # self-node h1
                pl.BlockSpec((tm, 1), lambda i, k: (i, 0)),       # f32 1/deg
                pl.BlockSpec(wl.shape, _const_map),
                pl.BlockSpec(wr.shape, _const_map),
                pl.BlockSpec(b.shape, _const_map),
                pl.BlockSpec(wc.shape, _const_map),
                pl.BlockSpec(bc.shape, _const_map),
            ],
            out_specs=pl.BlockSpec((tm, out_dim), lambda i, k: (i, 0)),
            scratch_shapes=[pltpu.VMEM((tm, f_pad), jnp.float32),
                            pltpu.VMEM((tm, h2_dim), jnp.float32)],
        ),
        compiler_params=pltpu.CompilerParams(
            dimension_semantics=("parallel", "arbitrary"),
            vmem_limit_bytes=VMEM_LIMIT),
    )(a_pad, h_pad, h_pad, dinv, wl, wr, b, wc, bc)


# --------------------------------------------------------------------------- forward
def graphsage_forward(x, edge_index, params):
    """x: (N, F) float32; edge_index: (2, E) int32 rows [src, dst]."""
    N, F = x.shape
    H1 = params["w1l"].shape[0]
    H2 = params["w2l"].shape[0]
    C = params["wc"].shape[0]

    tile = _choose_tile(N)
    tm = tk = tile
    n_pad = _round_up(max(N, tile), tile)
    f_pad = _round_up(F, LANE)
    h1_pad = _round_up(H1, LANE)
    h2_pad = _round_up(H2, LANE)
    c_pad = _round_up(C, LANE)

    src, dst = edge_index[0], edge_index[1]
    # Binary (0/1 count) adjacency built directly at padded size in its final
    # dtype; the 1/deg mean scale is applied in f32 inside the kernel finalize.
    a_pad = jnp.zeros((n_pad, n_pad), jnp.bfloat16).at[dst, src].add(
        jnp.ones_like(src, jnp.bfloat16))
    deg = jnp.zeros((n_pad,), jnp.float32).at[dst].add(1.0)
    dinv = jnp.where(deg > 0.0, 1.0 / jnp.maximum(deg, 1.0), 0.0).reshape(n_pad, 1)
    # TODO(synk): for large sparse graphs replace the dense binary A with a
    # CSR / scalar-prefetch gather aggregation (O(E*F) instead of O(N^2*F)),
    # and drop the A stream to int8 on v5e/v6e (fp8 on v7x) — 0/1 is exact.

    x_pad = _pad2d(x, n_pad, f_pad).astype(jnp.bfloat16)

    # Pre-transpose PyTorch (out, in) weights to (in, out), pad, cast to bf16.
    w1l = _pad2d(params["w1l"].T, f_pad, h1_pad).astype(jnp.bfloat16)
    w1r = _pad2d(params["w1r"].T, f_pad, h1_pad).astype(jnp.bfloat16)
    b1 = _pad2d(params["b1"].reshape(1, -1), 1, h1_pad)                 # f32
    w2l = _pad2d(params["w2l"].T, h1_pad, h2_pad).astype(jnp.bfloat16)
    w2r = _pad2d(params["w2r"].T, h1_pad, h2_pad).astype(jnp.bfloat16)
    b2 = _pad2d(params["b2"].reshape(1, -1), 1, h2_pad)                 # f32
    wc = _pad2d(params["wc"].T, h2_pad, c_pad).astype(jnp.bfloat16)
    bc = _pad2d(params["bc"].reshape(1, -1), 1, c_pad)                  # f32

    h1 = _sage_layer_call(a_pad, x_pad, dinv, w1l, w1r, b1, h1_pad, tm, tk)
    out_pad = _sage_classifier_call(a_pad, h1, dinv, w2l, w2r, b2, wc, bc,
                                    c_pad, tm, tk)
    return out_pad[:N, :C]


def _reference_forward(x, edge_index, params):
    """Pure-JAX f32 reference for validation."""
    N = x.shape[0]
    src, dst = edge_index[0], edge_index[1]
    A = jnp.zeros((N, N), jnp.float32).at[dst, src].add(1.0)
    deg = jnp.sum(A, axis=1, keepdims=True)
    A_norm = A / jnp.maximum(deg, 1.0)
    h1 = jnp.maximum(A_norm @ x @ params["w1l"].T + x @ params["w1r"].T
                     + params["b1"], 0.0)
    h2 = jnp.maximum(A_norm @ h1 @ params["w2l"].T + h1 @ params["w2r"].T
                     + params["b2"], 0.0)
    return h2 @ params["wc"].T + params["bc"]


def init_params(key, num_features, hidden1, hidden2, num_classes):
    ks = jax.random.split(key, 8)

    def lin(k, out_dim, in_dim):
        bound = 1.0 / jnp.sqrt(in_dim)
        return jax.random.uniform(k, (out_dim, in_dim), jnp.float32, -bound, bound)

    return {
        "w1l": lin(ks[0], hidden1, num_features),
        "w1r": lin(ks[1], hidden1, num_features),
        "b1": jax.random.uniform(ks[2], (hidden1,), jnp.float32, -0.1, 0.1),
        "w2l": lin(ks[3], hidden2, hidden1),
        "w2r": lin(ks[4], hidden2, hidden1),
        "b2": jax.random.uniform(ks[5], (hidden2,), jnp.float32, -0.1, 0.1),
        "wc": lin(ks[6], num_classes, hidden2),
        "bc": jax.random.uniform(ks[7], (num_classes,), jnp.float32, -0.1, 0.1),
    }


if __name__ == "__main__":
    key = jax.random.PRNGKey(0)
    k_x, k_p = jax.random.split(key)

    N, F_in, H1, H2, C = 8, 16, 32, 32, 4

    x = jax.random.normal(k_x, (N, F_in), jnp.float32)
    # Small ring-ish graph plus a few extra edges; rows are [src, dst].
    edge_index = jnp.array(
        [[0, 1, 2, 3, 4, 5, 6, 7, 0, 2, 4, 6],
         [1, 2, 3, 4, 5, 6, 7, 0, 4, 6, 0, 2]], dtype=jnp.int32)

    params = init_params(k_p, F_in, H1, H2, C)

    out = graphsage_forward(x, edge_index, params)
    jax.block_until_ready(out)
    assert out.shape == (N, C)

    ref = _reference_forward(x, edge_index, params)
    assert jnp.max(jnp.abs(out - ref)) < 0.15, "mismatch vs f32 reference"

    print("KERNEL_OK")
</pallas_src>

<mosaic_0001>
module attributes {stable_mosaic.version = 11 : i64} {
  func.func @_sage_layer_kernel(%arg0: i32, %arg1: i32, %arg2: memref<128x128xbf16, #tpu.memory_space<vmem>>, %arg3: memref<128x128xbf16, #tpu.memory_space<vmem>>, %arg4: memref<128x128xbf16, #tpu.memory_space<vmem>>, %arg5: memref<128x1xf32, #tpu.memory_space<vmem>>, %arg6: memref<128x128xbf16, #tpu.memory_space<vmem>>, %arg7: memref<128x128xbf16, #tpu.memory_space<vmem>>, %arg8: memref<1x128xf32, #tpu.memory_space<vmem>>, %arg9: memref<128x128xbf16, #tpu.memory_space<vmem>>, %arg10: memref<128x128xf32, #tpu.memory_space<vmem>>, %arg11: memref<128x128xf32, #tpu.memory_space<vmem>>) attributes {dimension_semantics = [#tpu.dimension_semantics<parallel>, #tpu.dimension_semantics<arbitrary>], iteration_bounds = array<i64: 1, 1>, scalar_prefetch = 0 : i64, scratch_operands = 2 : i64, tpu.core_type = #tpu.core_type<tc>, window_params = [{transform_indices = @transform_0, window_bounds = array<i64: 128, 128>}, {transform_indices = @transform_1, window_bounds = array<i64: 128, 128>}, {transform_indices = @transform_2, window_bounds = array<i64: 128, 128>}, {transform_indices = @transform_3, window_bounds = array<i64: 128, 1>}, {pipeline_mode = #tpu.pipeline_mode<synchronous>, transform_indices = @transform_4, window_bounds = array<i64: 128, 128>}, {pipeline_mode = #tpu.pipeline_mode<synchronous>, transform_indices = @transform_5, window_bounds = array<i64: 128, 128>}, {pipeline_mode = #tpu.pipeline_mode<synchronous>, transform_indices = @transform_6, window_bounds = array<i64: 1, 128>}, {transform_indices = @transform_7, window_bounds = array<i64: 128, 128>}]} {
    %c0_i32 = arith.constant 0 : i32
    %0 = arith.cmpi eq, %arg1, %c0_i32 : i32
    %1 = arith.extui %0 : i1 to i32
    %c0_i32_0 = arith.constant 0 : i32
    %2 = arith.cmpi ne, %1, %c0_i32_0 : i32
    scf.if %2 {
      %cst_10 = arith.constant 0.000000e+00 : f32
      %12 = vector.broadcast %cst_10 : f32 to vector<128x128xf32>
      %c0_11 = arith.constant 0 : index
      %c0_12 = arith.constant 0 : index
      %13 = vector.load %arg10[%c0_11, %c0_12] : memref<128x128xf32, #tpu.memory_space<vmem>>, vector<128x128xf32>
      tpu.vector_store %arg10[%c0_11, %c0_12], %12 {strides = array<i32>} : memref<128x128xf32, #tpu.memory_space<vmem>>, vector<128x128xf32>,
      %c0_13 = arith.constant 0 : index
      %c0_14 = arith.constant 0 : index
      %14 = vector.load %arg4[%c0_13, %c0_14] : memref<128x128xbf16, #tpu.memory_space<vmem>>, vector<128x128xbf16>
      %c0_15 = arith.constant 0 : index
      %c0_16 = arith.constant 0 : index
      %15 = vector.load %arg7[%c0_15, %c0_16] : memref<128x128xbf16, #tpu.memory_space<vmem>>, vector<128x128xbf16>
      %cst_17 = arith.constant dense<0.000000e+00> : vector<128x128xf32>
      %16 = tpu.matmul %14, %15, %cst_17 {dimension_numbers = #tpu.dot_dimension_numbers<[1], [0], [0], [1], [0, 0, 1, 1], [], []>} : vector<128x128xbf16>, vector<128x128xbf16>, vector<128x128xf32> -> vector<128x128xf32>
      %c0_18 = arith.constant 0 : index
      %c0_19 = arith.constant 0 : index
      %17 = vector.load %arg8[%c0_18, %c0_19] : memref<1x128xf32, #tpu.memory_space<vmem>>, vector<1x128xf32>
      %18 = vector.broadcast %17 : vector<1x128xf32> to vector<128x128xf32>
      %19 = arith.addf %16, %18 : vector<128x128xf32>
      %c0_20 = arith.constant 0 : index
      %c0_21 = arith.constant 0 : index
      %20 = vector.load %arg11[%c0_20, %c0_21] : memref<128x128xf32, #tpu.memory_space<vmem>>, vector<128x128xf32>
      tpu.vector_store %arg11[%c0_20, %c0_21], %19 {strides = array<i32>} : memref<128x128xf32, #tpu.memory_space<vmem>>, vector<128x128xf32>,
    } else {
    }
    %c0 = arith.constant 0 : index
    %c0_1 = arith.constant 0 : index
    %3 = vector.load %arg10[%c0, %c0_1] : memref<128x128xf32, #tpu.memory_space<vmem>>, vector<128x128xf32>
    %c0_2 = arith.constant 0 : index
    %c0_3 = arith.constant 0 : index
    %4 = vector.load %arg2[%c0_2, %c0_3] : memref<128x128xbf16, #tpu.memory_space<vmem>>, vector<128x128xbf16>
    %c0_4 = arith.constant 0 : index
    %c0_5 = arith.constant 0 : index
    %5 = vector.load %arg3[%c0_4, %c0_5] : memref<128x128xbf16, #tpu.memory_space<vmem>>, vector<128x128xbf16>
    %cst = arith.constant dense<0.000000e+00> : vector<128x128xf32>
    %6 = tpu.matmul %4, %5, %cst {dimension_numbers = #tpu.dot_dimension_numbers<[1], [0], [0], [1], [0, 0, 1, 1], [], []>} : vector<128x128xbf16>, vector<128x128xbf16>, vector<128x128xf32> -> vector<128x128xf32>
    %7 = arith.addf %3, %6 : vector<128x128xf32>
    %c0_6 = arith.constant 0 : index
    %c0_7 = arith.constant 0 : index
    %8 = vector.load %arg10[%c0_6, %c0_7] : memref<128x128xf32, #tpu.memory_space<vmem>>, vector<128x128xf32>
    tpu.vector_store %arg10[%c0_6, %c0_7], %7 {strides = array<i32>} : memref<128x128xf32, #tpu.memory_space<vmem>>, vector<128x128xf32>,
    %c0_i32_8 = arith.constant 0 : i32
    %9 = arith.cmpi eq, %arg1, %c0_i32_8 : i32
    %10 = arith.extui %9 : i1 to i32
    %c0_i32_9 = arith.constant 0 : i32
    %11 = arith.cmpi ne, %10, %c0_i32_9 : i32
    scf.if %11 {
      %c0_10 = arith.constant 0 : index
      %c0_11 = arith.constant 0 : index
      %12 = vector.load %arg10[%c0_10, %c0_11] : memref<128x128xf32, #tpu.memory_space<vmem>>, vector<128x128xf32>
      %c0_12 = arith.constant 0 : index
      %c0_13 = arith.constant 0 : index
      %13 = vector.load %arg5[%c0_12, %c0_13] : memref<128x1xf32, #tpu.memory_space<vmem>>, vector<128x1xf32>
      %14 = vector.broadcast %13 : vector<128x1xf32> to vector<128x128xf32>
      %15 = arith.mulf %12, %14 : vector<128x128xf32>
      %16 = arith.truncf %15 : vector<128x128xf32> to vector<128x128xbf16>
      %c0_14 = arith.constant 0 : index
      %c0_15 = arith.constant 0 : index
      %17 = vector.load %arg6[%c0_14, %c0_15] : memref<128x128xbf16, #tpu.memory_space<vmem>>, vector<128x128xbf16>
      %cst_16 = arith.constant dense<0.000000e+00> : vector<128x128xf32>
      %18 = tpu.matmul %16, %17, %cst_16 {dimension_numbers = #tpu.dot_dimension_numbers<[1], [0], [0], [1], [0, 0, 1, 1], [], []>} : vector<128x128xbf16>, vector<128x128xbf16>, vector<128x128xf32> -> vector<128x128xf32>
      %c0_17 = arith.constant 0 : index
      %c0_18 = arith.constant 0 : index
      %19 = vector.load %arg11[%c0_17, %c0_18] : memref<128x128xf32, #tpu.memory_space<vmem>>, vector<128x128xf32>
      %20 = arith.addf %18, %19 : vector<128x128xf32>
      %cst_19 = arith.constant 0.000000e+00 : f32
      %21 = vector.broadcast %cst_19 : f32 to vector<128x128xf32>
      %22 = arith.maximumf %20, %21 : vector<128x128xf32>
      %23 = arith.truncf %22 : vector<128x128xf32> to vector<128x128xbf16>
      %c0_20 = arith.constant 0 : index
      %c0_21 = arith.constant 0 : index
      %24 = vector.load %arg9[%c0_20, %c0_21] : memref<128x128xbf16, #tpu.memory_space<vmem>>, vector<128x128xbf16>
      tpu.vector_store %arg9[%c0_20, %c0_21], %23 {strides = array<i32>} : memref<128x128xbf16, #tpu.memory_space<vmem>>, vector<128x128xbf16>,
    } else {
    }
    return
  }
  func.func @transform_0(%arg0: i32, %arg1: i32) -> (i32, i32) {
    %c0_i32 = arith.constant 0 : i32
    return %arg0, %arg1 : i32, i32
  }
  func.func @transform_1(%arg0: i32, %arg1: i32) -> (i32, i32) {
    %c0_i32 = arith.constant 0 : i32
    %c0_i32_0 = arith.constant 0 : i32
    return %arg1, %c0_i32 : i32, i32
  }
  func.func @transform_2(%arg0: i32, %arg1: i32) -> (i32, i32) {
    %c0_i32 = arith.constant 0 : i32
    %c0_i32_0 = arith.constant 0 : i32
    return %arg0, %c0_i32 : i32, i32
  }
  func.func @transform_3(%arg0: i32, %arg1: i32) -> (i32, i32) {
    %c0_i32 = arith.constant 0 : i32
    %c0_i32_0 = arith.constant 0 : i32
    return %arg0, %c0_i32 : i32, i32
  }
  func.func @transform_4(%arg0: i32, %arg1: i32) -> (i32, i32) {
    %c0_i32 = arith.constant 0 : i32
    %c0_i32_0 = arith.constant 0 : i32
    %c0_i32_1 = arith.constant 0 : i32
    return %c0_i32, %c0_i32_0 : i32, i32
  }
  func.func @transform_5(%arg0: i32, %arg1: i32) -> (i32, i32) {
    %c0_i32 = arith.constant 0 : i32
    %c0_i32_0 = arith.constant 0 : i32
    %c0_i32_1 = arith.constant 0 : i32
    return %c0_i32, %c0_i32_0 : i32, i32
  }
  func.func @transform_6(%arg0: i32, %arg1: i32) -> (i32, i32) {
    %c0_i32 = arith.constant 0 : i32
    %c0_i32_0 = arith.constant 0 : i32
    %c0_i32_1 = arith.constant 0 : i32
    return %c0_i32, %c0_i32_0 : i32, i32
  }
  func.func @transform_7(%arg0: i32, %arg1: i32) -> (i32, i32) {
    %c0_i32 = arith.constant 0 : i32
    %c0_i32_0 = arith.constant 0 : i32
    return %arg0, %c0_i32 : i32, i32
  }
}

</mosaic_0001>

<llo_original>
// kernel: tpu_custom_call.1
$region0: #{tpu_custom_call.1}
  #allocation0 [shape = 'u32[]', space=smem, size = 0x4, offset = 0x4, fixed_abs, tag = 'smem constant byte address 0x4 - core index']
  #allocation1 [shape = 'u32[72,128]{1,0:T(1,128)}', space=vmem, size = 0x9000, scoped, tag = 'internal scratch']
  #allocation2 [shape = 'f32[128,128]{1,0:T(8,128)}', space=vmem, size = 0x10000, scoped, tag = 'scratch operand']
  #allocation3 [shape = 'f32[128,128]{1,0:T(8,128)}', space=vmem, size = 0x10000, scoped, tag = 'scratch operand']
  %s0 = inlined_call_operand.vmem [shape: bf16[128,128], index: 0, kind: input, shape index: {}]
  %s1 = inlined_call_operand.vmem [shape: bf16[128,128], index: 1, kind: input, shape index: {}]
  %s2 = inlined_call_operand.hbm [shape: bf16[128,128], index: 2, kind: input, shape index: {}]
  %s3 = inlined_call_operand.vmem [shape: f32[128,1], index: 3, kind: input, shape index: {}]
  %s4 = inlined_call_operand.hbm [shape: bf16[128,128], index: 4, kind: input, shape index: {}]
  %s5 = inlined_call_operand.hbm [shape: bf16[128,128], index: 5, kind: input, shape index: {}]
  %s6 = inlined_call_operand.vmem [shape: f32[1,128], index: 6, kind: input, shape index: {}]
  %s7 = inlined_call_operand.hbm [shape: bf16[128,128], index: 7, kind: output, shape index: {}]
  %s8 = sld [smem:[#allocation0]]
  $region58: #{tpu_custom_call.1} parent=0
    _
  %s10 = ssub.s32 1, %s8
  %s11 = scalar_select 0, %s10, %s8
  $region1: #{tpu_custom_call.1} parent=0
    #allocation4 [shape = 'u8[32768]{0}', space=vmem, size = 0x8000, scoped, tag = 'input window, operand 2, single buffered']
    #allocation5 [shape = 's32[1]{0}', space=sflag, size = 0x4, scoped, tag = 'scoped memory for tpu_custom_call.1']
    #allocation6 [shape = 's32[1]{0}', space=sflag, size = 0x4, scoped, tag = 'scoped memory for tpu_custom_call.1']
    #allocation7 [shape = 'u8[32768]{0}', space=vmem, size = 0x8000, scoped, tag = 'input window, operand 4, single buffered']
    #allocation8 [shape = 's32[1]{0}', space=sflag, size = 0x4, scoped, tag = 'scoped memory for tpu_custom_call.1']
    #allocation9 [shape = 'u8[32768]{0}', space=vmem, size = 0x8000, scoped, tag = 'input window, operand 5, single buffered']
    #allocation10 [shape = 'u8[32768]{0}', space=vmem, size = 0x8000, scoped, tag = 'output window, operand 0, single buffered']
    %12 = vsyncpa [#allocation5], 0
    %13 = vsyncpa [#allocation8], 0
    %14 = vsyncpa [#allocation6], 0
    // Predicated region
    $region2: #{tpu_custom_call.1} parent=1 // pred_check
      _
    $region3: #{tpu_custom_call.1} parent=1 // pred_check_branch
      %16 = sbr.rel (0) target = $region5
    $region4: #{tpu_custom_call.1} parent=1 // pred_region
      _
    $region5: #{tpu_custom_call.1} parent=1 // pred_fallthru
      _
    // Predicated region
    $region6: #{tpu_custom_call.1} parent=1 // pred_check
      _
    $region7: #{tpu_custom_call.1} parent=1 // pred_check_branch
      %18 = sbr.rel (0) target = $region9
    $region8: #{tpu_custom_call.1} parent=1 // pred_region
      _
    $region9: #{tpu_custom_call.1} parent=1 // pred_fallthru
      _
    // Predicated region
    $region10: #{tpu_custom_call.1} parent=1 // pred_check
      _
    $region11: #{tpu_custom_call.1} parent=1 // pred_check_branch
      %20 = sbr.rel (0) target = $region13
    $region12: #{tpu_custom_call.1} parent=1 // pred_region
      %22 = vsyncadd [#allocation5], 0
      %s23 = sshll.u32 %s2, 4
      %s24 = int_to_ptr.hbm [resolvable:$true] %s23
      %s25 = sshll.u32 [#allocation4], 4
      %s26 = int_to_ptr.vmem [resolvable:$true] %s25
      %31 = dma.hbm_to_vmem [thread:$0]  %s24, 1024, %s26, [#allocation5], 64, 64, 4
    $region13: #{tpu_custom_call.1} parent=1 // pred_fallthru
      _
    // Predicated region
    $region14: #{tpu_custom_call.1} parent=1 // pred_check
      _
    $region15: #{tpu_custom_call.1} parent=1 // pred_check_branch
      %33 = sbr.rel (0) target = $region17
    $region16: #{tpu_custom_call.1} parent=1 // pred_region
      _
    $region17: #{tpu_custom_call.1} parent=1 // pred_fallthru
      _
    // Predicated region
    $region18: #{tpu_custom_call.1} parent=1 // pred_check
      _
    $region19: #{tpu_custom_call.1} parent=1 // pred_check_branch
      %35 = sbr.rel (0) target = $region21
    $region20: #{tpu_custom_call.1} parent=1 // pred_region
      %37 = vsyncadd [#allocation8], 0
      %s38 = sshll.u32 %s4, 4
      %s39 = int_to_ptr.hbm [resolvable:$true] %s38
      %s40 = sshll.u32 [#allocation7], 4
      %s41 = int_to_ptr.vmem [resolvable:$true] %s40
      %46 = dma.hbm_to_vmem [thread:$0]  %s39, 1024, %s41, [#allocation8], 64, 64, 4
    $region21: #{tpu_custom_call.1} parent=1 // pred_fallthru
      _
    // Predicated region
    $region22: #{tpu_custom_call.1} parent=1 // pred_check
      _
    $region23: #{tpu_custom_call.1} parent=1 // pred_check_branch
      %48 = sbr.rel (0) target = $region25
    $region24: #{tpu_custom_call.1} parent=1 // pred_region
      %50 = vsyncadd [#allocation8], 0
      %s51 = sshll.u32 %s5, 4
      %s52 = int_to_ptr.hbm [resolvable:$true] %s51
      %s53 = sshll.u32 [#allocation9], 4
      %s54 = int_to_ptr.vmem [resolvable:$true] %s53
      %59 = dma.hbm_to_vmem [thread:$0]  %s52, 1024, %s54, [#allocation8], 64, 64, 4
    $region25: #{tpu_custom_call.1} parent=1 // pred_fallthru
      _
    // Predicated region
    $region26: #{tpu_custom_call.1} parent=1 // pred_check
      _
    $region27: #{tpu_custom_call.1} parent=1 // pred_check_branch
      %61 = sbr.rel (0) target = $region29
    $region28: #{tpu_custom_call.1} parent=1 // pred_region
      _
    $region29: #{tpu_custom_call.1} parent=1 // pred_fallthru
      _
    // Predicated region
    $region30: #{tpu_custom_call.1} parent=1 // pred_check
      _
    $region31: #{tpu_custom_call.1} parent=1 // pred_check_branch
      %63 = sbr.rel (0) target = $region33
    $region32: #{tpu_custom_call.1} parent=1 // pred_region
      %65 = dma.done [#allocation5], 1024
    $region33: #{tpu_custom_call.1} parent=1 // pred_fallthru
      _
    // Predicated region
    $region34: #{tpu_custom_call.1} parent=1 // pred_check
      _
    $region35: #{tpu_custom_call.1} parent=1 // pred_check_branch
      %67 = sbr.rel (0) target = $region37
    $region36: #{tpu_custom_call.1} parent=1 // pred_region
      %69 = dma.done [#allocation8], 1024
    $region37: #{tpu_custom_call.1} parent=1 // pred_fallthru
      _
    // Predicated region
    $region38: #{tpu_custom_call.1} parent=1 // pred_check
      _
    $region39: #{tpu_custom_call.1} parent=1 // pred_check_branch
      %71 = sbr.rel (0) target = $region41
    $region40: #{tpu_custom_call.1} parent=1 // pred_region
      %73 = dma.done [#allocation8], 1024
    $region41: #{tpu_custom_call.1} parent=1 // pred_fallthru
      _
    %p74 = scmp.eq.s32.totalorder 0, 0
    // Predicated region
    $region42: #{tpu_custom_call.1} parent=1 // pred_check
      %p75 = pneg %p74
    $region43: #{tpu_custom_call.1} parent=1 // pred_check_branch
      %77 = sbr.rel (%p75) target = $region45
    $region44: #{tpu_custom_call.1} parent=1 // pred_region
      %78 = vst [vmem:[#allocation2] sm:$0xff] 0.0
      %79 = vst [vmem:[#allocation2 + $0x8] sm:$0xff] 0.0
      %80 = vst [vmem:[#allocation2 + $0x10] sm:$0xff] 0.0
      %81 = vst [vmem:[#allocation2 + $0x18] sm:$0xff] 0.0
      %82 = vst [vmem:[#allocation2 + $0x20] sm:$0xff] 0.0
      %83 = vst [vmem:[#allocation2 + $0x28] sm:$0xff] 0.0
      %84 = vst [vmem:[#allocation2 + $0x30] sm:$0xff] 0.0
      %85 = vst [vmem:[#allocation2 + $0x38] sm:$0xff] 0.0
      %86 = vst [vmem:[#allocation2 + $0x40] sm:$0xff] 0.0
      %87 = vst [vmem:[#allocation2 + $0x48] sm:$0xff] 0.0
      %88 = vst [vmem:[#allocation2 + $0x50] sm:$0xff] 0.0
      %89 = vst [vmem:[#allocation2 + $0x58] sm:$0xff] 0.0
      %90 = vst [vmem:[#allocation2 + $0x60] sm:$0xff] 0.0
      %91 = vst [vmem:[#allocation2 + $0x68] sm:$0xff] 0.0
      %92 = vst [vmem:[#allocation2 + $0x70] sm:$0xff] 0.0
      %93 = vst [vmem:[#allocation2 + $0x78] sm:$0xff] 0.0
      %v94 = vld [vmem:[#allocation4] sm:$0xf]
      %v95 = vld [vmem:[#allocation4 + $0x4] sm:$0xf]
      %v96 = vld [vmem:[#allocation4 + $0x8] sm:$0xf]
      %v97 = vld [vmem:[#allocation4 + $0xc] sm:$0xf]
      %v98 = vld [vmem:[#allocation4 + $0x10] sm:$0xf]
      %v99 = vld [vmem:[#allocation4 + $0x14] sm:$0xf]
      %v100 = vld [vmem:[#allocation4 + $0x18] sm:$0xf]
      %v101 = vld [vmem:[#allocation4 + $0x1c] sm:$0xf]
      %v102 = vld [vmem:[#allocation4 + $0x20] sm:$0xf]
      %v103 = vld [vmem:[#allocation4 + $0x24] sm:$0xf]
      %v104 = vld [vmem:[#allocation4 + $0x28] sm:$0xf]
      %v105 = vld [vmem:[#allocation4 + $0x2c] sm:$0xf]
      %v106 = vld [vmem:[#allocation4 + $0x30] sm:$0xf]
      %v107 = vld [vmem:[#allocation4 + $0x34] sm:$0xf]
      %v108 = vld [vmem:[#allocation4 + $0x38] sm:$0xf]
      %v109 = vld [vmem:[#allocation4 + $0x3c] sm:$0xf]
      %v110 = vld [vmem:[#allocation9] sm:$0xf]
      %v111 = vld [vmem:[#allocation9 + $0x4] sm:$0xf]
      %v112 = vld [vmem:[#allocation9 + $0x8] sm:$0xf]
      %v113 = vld [vmem:[#allocation9 + $0xc] sm:$0xf]
      %v114 = vld [vmem:[#allocation9 + $0x10] sm:$0xf]
      %v115 = vld [vmem:[#allocation9 + $0x14] sm:$0xf]
      %v116 = vld [vmem:[#allocation9 + $0x18] sm:$0xf]
      %v117 = vld [vmem:[#allocation9 + $0x1c] sm:$0xf]
      %v118 = vld [vmem:[#allocation9 + $0x20] sm:$0xf]
      %v119 = vld [vmem:[#allocation9 + $0x24] sm:$0xf]
      %v120 = vld [vmem:[#allocation9 + $0x28] sm:$0xf]
      %v121 = vld [vmem:[#allocation9 + $0x2c] sm:$0xf]
      %v122 = vld [vmem:[#allocation9 + $0x30] sm:$0xf]
      %v123 = vld [vmem:[#allocation9 + $0x34] sm:$0xf]
      %v124 = vld [vmem:[#allocation9 + $0x38] sm:$0xf]
      %v125 = vld [vmem:[#allocation9 + $0x3c] sm:$0xf]
      %v126 = vld [vmem:[%s6] sm:$0x1]
      %v128 = vperm.slane %v126, 0
      %v146 = vunpack.c.l.b16 %v94
      %v147 = vunpack.c.l.b16 %v95
      %v148 = vunpack.c.l.b16 %v96
      %v149 = vunpack.c.l.b16 %v97
      %v150 = vunpack.c.l.b16 %v98
      %v151 = vunpack.c.l.b16 %v99
      %v152 = vunpack.c.l.b16 %v100
      %v153 = vunpack.c.l.b16 %v101
      %v154 = vunpack.c.l.b16 %v102
      %v155 = vunpack.c.l.b16 %v103
      %v156 = vunpack.c.l.b16 %v104
      %v157 = vunpack.c.l.b16 %v105
      %v158 = vunpack.c.l.b16 %v106
      %v159 = vunpack.c.l.b16 %v107
      %v160 = vunpack.c.l.b16 %v108
      %v161 = vunpack.c.l.b16 %v109
      %v162 = vpack.c.b16 %v147, %v146
      %v163 = vpack.c.b16 %v149, %v148
      %v164 = vpack.c.b16 %v151, %v150
      %v165 = vpack.c.b16 %v153, %v152
      %v166 = vpack.c.b16 %v155, %v154
      %v167 = vpack.c.b16 %v157, %v156
      %v168 = vpack.c.b16 %v159, %v158
      %v169 = vpack.c.b16 %v161, %v160
      %v194 = vunpack.c.l.b16 %v110
      %v195 = vunpack.c.l.b16 %v111
      %v196 = vunpack.c.l.b16 %v112
      %v197 = vunpack.c.l.b16 %v113
      %v198 = vunpack.c.l.b16 %v114
      %v199 = vunpack.c.l.b16 %v115
      %v200 = vunpack.c.l.b16 %v116
      %v201 = vunpack.c.l.b16 %v117
      %v202 = vunpack.c.l.b16 %v118
      %v203 = vunpack.c.l.b16 %v119
      %v204 = vunpack.c.l.b16 %v120
      %v205 = vunpack.c.l.b16 %v121
      %v206 = vunpack.c.l.b16 %v122
      %v207 = vunpack.c.l.b16 %v123
      %v208 = vunpack.c.l.b16 %v124
      %v209 = vunpack.c.l.b16 %v125
      %v210 = vpack.c.b16 %v195, %v194
      %v211 = vpack.c.b16 %v197, %v196
      %v212 = vpack.c.b16 %v199, %v198
      %v213 = vpack.c.b16 %v201, %v200
      %v214 = vpack.c.b16 %v203, %v202
      %v215 = vpack.c.b16 %v205, %v204
      %v216 = vpack.c.b16 %v207, %v206
      %v217 = vpack.c.b16 %v209, %v208
      %226 = vmatpush.bf16.msra.mxu0 %v217
      %227 = vmatpush.bf16.msra.mxu0 %v216
      %228 = vmatpush.bf16.msra.mxu0 %v215
      %229 = vmatpush.bf16.msra.mxu0 %v214
      %230 = vmatpush.bf16.msra.mxu0 %v213
      %231 = vmatpush.bf16.msra.mxu0 %v212
      %232 = vmatpush.bf16.msra.mxu0 %v211
      %233 = vmatpush.bf16.msra.mxu0 %v210
      %234 = vmatmul.bf16.gmra.mxu0 %v162
      %v235 = vpop.f32.mrf.mxu0
      %v236 = vadd.f32 %v128, %v235
      %v237 = vpop.f32.mrf.mxu0
      %v238 = vadd.f32 %v128, %v237
      %239 = vmatmul.bf16.gmra.mxu0 %v163
      %v240 = vpop.f32.mrf.mxu0
      %v241 = vadd.f32 %v128, %v240
      %v242 = vpop.f32.mrf.mxu0
      %v243 = vadd.f32 %v128, %v242
      %244 = vmatmul.bf16.gmra.mxu0 %v164
      %v245 = vpop.f32.mrf.mxu0
      %v246 = vadd.f32 %v128, %v245
      %v247 = vpop.f32.mrf.mxu0
      %v248 = vadd.f32 %v128, %v247
      %249 = vmatmul.bf16.gmra.mxu0 %v165
      %v250 = vpop.f32.mrf.mxu0
      %v251 = vadd.f32 %v128, %v250
      %v252 = vpop.f32.mrf.mxu0
      %v253 = vadd.f32 %v128, %v252
      %254 = vmatmul.bf16.gmra.mxu0 %v166
      %v255 = vpop.f32.mrf.mxu0
      %v256 = vadd.f32 %v128, %v255
      %v257 = vpop.f32.mrf.mxu0
      %v258 = vadd.f32 %v128, %v257
      %259 = vmatmul.bf16.gmra.mxu0 %v167
      %v260 = vpop.f32.mrf.mxu0
      %v261 = vadd.f32 %v128, %v260
      %v262 = vpop.f32.mrf.mxu0
      %v263 = vadd.f32 %v128, %v262
      %264 = vmatmul.bf16.gmra.mxu0 %v168
      %v265 = vpop.f32.mrf.mxu0
      %v266 = vadd.f32 %v128, %v265
      %v267 = vpop.f32.mrf.mxu0
      %v268 = vadd.f32 %v128, %v267
      %269 = vmatmul.bf16.gmra.mxu0 %v169
      %v270 = vpop.f32.mrf.mxu0
      %v271 = vadd.f32 %v128, %v270
      %v272 = vpop.f32.mrf.mxu0
      %v273 = vadd.f32 %v128, %v272
      %274 = vdwg.mxu0
      %275 = vst [vmem:[#allocation3] sm:$0xff] %v236
      %276 = vst [vmem:[#allocation3 + $0x8] sm:$0xff] %v238
      %277 = vst [vmem:[#allocation3 + $0x10] sm:$0xff] %v241
      %278 = vst [vmem:[#allocation3 + $0x18] sm:$0xff] %v243
      %279 = vst [vmem:[#allocation3 + $0x20] sm:$0xff] %v246
      %280 = vst [vmem:[#allocation3 + $0x28] sm:$0xff] %v248
      %281 = vst [vmem:[#allocation3 + $0x30] sm:$0xff] %v251
      %282 = vst [vmem:[#allocation3 + $0x38] sm:$0xff] %v253
      %283 = vst [vmem:[#allocation3 + $0x40] sm:$0xff] %v256
      %284 = vst [vmem:[#allocation3 + $0x48] sm:$0xff] %v258
      %285 = vst [vmem:[#allocation3 + $0x50] sm:$0xff] %v261
      %286 = vst [vmem:[#allocation3 + $0x58] sm:$0xff] %v263
      %287 = vst [vmem:[#allocation3 + $0x60] sm:$0xff] %v266
      %288 = vst [vmem:[#allocation3 + $0x68] sm:$0xff] %v268
      %289 = vst [vmem:[#allocation3 + $0x70] sm:$0xff] %v271
      %290 = vst [vmem:[#allocation3 + $0x78] sm:$0xff] %v273
    $region45: #{tpu_custom_call.1} parent=1 // pred_fallthru
      _
    %v291 = vld [vmem:[#allocation2] sm:$0xff]
    %v292 = vld [vmem:[#allocation2 + $0x8] sm:$0xff]
    %v293 = vld [vmem:[#allocation2 + $0x10] sm:$0xff]
    %v294 = vld [vmem:[#allocation2 + $0x18] sm:$0xff]
    %v295 = vld [vmem:[#allocation2 + $0x20] sm:$0xff]
    %v296 = vld [vmem:[#allocation2 + $0x28] sm:$0xff]
    %v297 = vld [vmem:[#allocation2 + $0x30] sm:$0xff]
    %v298 = vld [vmem:[#allocation2 + $0x38] sm:$0xff]
    %v299 = vld [vmem:[#allocation2 + $0x40] sm:$0xff]
    %v300 = vld [vmem:[#allocation2 + $0x48] sm:$0xff]
    %v301 = vld [vmem:[#allocation2 + $0x50] sm:$0xff]
    %v302 = vld [vmem:[#allocation2 + $0x58] sm:$0xff]
    %v303 = vld [vmem:[#allocation2 + $0x60] sm:$0xff]
    %v304 = vld [vmem:[#allocation2 + $0x68] sm:$0xff]
    %v305 = vld [vmem:[#allocation2 + $0x70] sm:$0xff]
    %v306 = vld [vmem:[#allocation2 + $0x78] sm:$0xff]
    %v307 = vld [vmem:[%s0] sm:$0xf]
    %v308 = vld [vmem:[%s0 + $0x4] sm:$0xf]
    %v309 = vld [vmem:[%s0 + $0x8] sm:$0xf]
    %v310 = vld [vmem:[%s0 + $0xc] sm:$0xf]
    %v311 = vld [vmem:[%s0 + $0x10] sm:$0xf]
    %v312 = vld [vmem:[%s0 + $0x14] sm:$0xf]
    %v313 = vld [vmem:[%s0 + $0x18] sm:$0xf]
    %v314 = vld [vmem:[%s0 + $0x1c] sm:$0xf]
    %v315 = vld [vmem:[%s0 + $0x20] sm:$0xf]
    %v316 = vld [vmem:[%s0 + $0x24] sm:$0xf]
    %v317 = vld [vmem:[%s0 + $0x28] sm:$0xf]
    %v318 = vld [vmem:[%s0 + $0x2c] sm:$0xf]
    %v319 = vld [vmem:[%s0 + $0x30] sm:$0xf]
    %v320 = vld [vmem:[%s0 + $0x34] sm:$0xf]
    %v321 = vld [vmem:[%s0 + $0x38] sm:$0xf]
    %v322 = vld [vmem:[%s0 + $0x3c] sm:$0xf]
    %v323 = vld [vmem:[%s1] sm:$0xf]
    %v324 = vld [vmem:[%s1 + $0x4] sm:$0xf]
    %v325 = vld [vmem:[%s1 + $0x8] sm:$0xf]
    %v326 = vld [vmem:[%s1 + $0xc] sm:$0xf]
    %v327 = vld [vmem:[%s1 + $0x10] sm:$0xf]
    %v328 = vld [vmem:[%s1 + $0x14] sm:$0xf]
    %v329 = vld [vmem:[%s1 + $0x18] sm:$0xf]
    %v330 = vld [vmem:[%s1 + $0x1c] sm:$0xf]
    %v331 = vld [vmem:[%s1 + $0x20] sm:$0xf]
    %v332 = vld [vmem:[%s1 + $0x24] sm:$0xf]
    %v333 = vld [vmem:[%s1 + $0x28] sm:$0xf]
    %v334 = vld [vmem:[%s1 + $0x2c] sm:$0xf]
    %v335 = vld [vmem:[%s1 + $0x30] sm:$0xf]
    %v336 = vld [vmem:[%s1 + $0x34] sm:$0xf]
    %v337 = vld [vmem:[%s1 + $0x38] sm:$0xf]
    %v338 = vld [vmem:[%s1 + $0x3c] sm:$0xf]
    %v355 = vunpack.c.l.b16 %v307
    %v356 = vunpack.c.l.b16 %v308
    %v357 = vunpack.c.l.b16 %v309
    %v358 = vunpack.c.l.b16 %v310
    %v359 = vunpack.c.l.b16 %v311
    %v360 = vunpack.c.l.b16 %v312
    %v361 = vunpack.c.l.b16 %v313
    %v362 = vunpack.c.l.b16 %v314
    %v363 = vunpack.c.l.b16 %v315
    %v364 = vunpack.c.l.b16 %v316
    %v365 = vunpack.c.l.b16 %v317
    %v366 = vunpack.c.l.b16 %v318
    %v367 = vunpack.c.l.b16 %v319
    %v368 = vunpack.c.l.b16 %v320
    %v369 = vunpack.c.l.b16 %v321
    %v370 = vunpack.c.l.b16 %v322
    %v371 = vpack.c.b16 %v356, %v355
    %v372 = vpack.c.b16 %v358, %v357
    %v373 = vpack.c.b16 %v360, %v359
    %v374 = vpack.c.b16 %v362, %v361
    %v375 = vpack.c.b16 %v364, %v363
    %v376 = vpack.c.b16 %v366, %v365
    %v377 = vpack.c.b16 %v368, %v367
    %v378 = vpack.c.b16 %v370, %v369
    %v403 = vunpack.c.l.b16 %v323
    %v404 = vunpack.c.l.b16 %v324
    %v405 = vunpack.c.l.b16 %v325
    %v406 = vunpack.c.l.b16 %v326
    %v407 = vunpack.c.l.b16 %v327
    %v408 = vunpack.c.l.b16 %v328
    %v409 = vunpack.c.l.b16 %v329
    %v410 = vunpack.c.l.b16 %v330
    %v411 = vunpack.c.l.b16 %v331
    %v412 = vunpack.c.l.b16 %v332
    %v413 = vunpack.c.l.b16 %v333
    %v414 = vunpack.c.l.b16 %v334
    %v415 = vunpack.c.l.b16 %v335
    %v416 = vunpack.c.l.b16 %v336
    %v417 = vunpack.c.l.b16 %v337
    %v418 = vunpack.c.l.b16 %v338
    %v419 = vpack.c.b16 %v404, %v403
    %v420 = vpack.c.b16 %v406, %v405
    %v421 = vpack.c.b16 %v408, %v407
    %v422 = vpack.c.b16 %v410, %v409
    %v423 = vpack.c.b16 %v412, %v411
    %v424 = vpack.c.b16 %v414, %v413
    %v425 = vpack.c.b16 %v416, %v415
    %v426 = vpack.c.b16 %v418, %v417
    %435 = vmatpush.bf16.msra.mxu0 %v426
    %436 = vmatpush.bf16.msra.mxu0 %v425
    %437 = vmatpush.bf16.msra.mxu0 %v424
    %438 = vmatpush.bf16.msra.mxu0 %v423
    %439 = vmatpush.bf16.msra.mxu0 %v422
    %440 = vmatpush.bf16.msra.mxu0 %v421
    %441 = vmatpush.bf16.msra.mxu0 %v420
    %442 = vmatpush.bf16.msra.mxu0 %v419
    %443 = vmatmul.bf16.gmra.mxu0 %v371
    %v444 = vpop.f32.mrf.mxu0
    %v445 = vadd.f32 0.0, %v444
    %v446 = vpop.f32.mrf.mxu0
    %v447 = vadd.f32 0.0, %v446
    %448 = vmatmul.bf16.gmra.mxu0 %v372
    %v449 = vpop.f32.mrf.mxu0
    %v450 = vadd.f32 0.0, %v449
    %v451 = vpop.f32.mrf.mxu0
    %v452 = vadd.f32 0.0, %v451
    %453 = vmatmul.bf16.gmra.mxu0 %v373
    %v454 = vpop.f32.mrf.mxu0
    %v455 = vadd.f32 0.0, %v454
    %v456 = vpop.f32.mrf.mxu0
    %v457 = vadd.f32 0.0, %v456
    %458 = vmatmul.bf16.gmra.mxu0 %v374
    %v459 = vpop.f32.mrf.mxu0
    %v460 = vadd.f32 0.0, %v459
    %v461 = vpop.f32.mrf.mxu0
    %v462 = vadd.f32 0.0, %v461
    %463 = vmatmul.bf16.gmra.mxu0 %v375
    %v464 = vpop.f32.mrf.mxu0
    %v465 = vadd.f32 0.0, %v464
    %v466 = vpop.f32.mrf.mxu0
    %v467 = vadd.f32 0.0, %v466
    %468 = vmatmul.bf16.gmra.mxu0 %v376
    %v469 = vpop.f32.mrf.mxu0
    %v470 = vadd.f32 0.0, %v469
    %v471 = vpop.f32.mrf.mxu0
    %v472 = vadd.f32 0.0, %v471
    %473 = vmatmul.bf16.gmra.mxu0 %v377
    %v474 = vpop.f32.mrf.mxu0
    %v475 = vadd.f32 0.0, %v474
    %v476 = vpop.f32.mrf.mxu0
    %v477 = vadd.f32 0.0, %v476
    %478 = vmatmul.bf16.gmra.mxu0 %v378
    %v479 = vpop.f32.mrf.mxu0
    %v480 = vadd.f32 0.0, %v479
    %v481 = vpop.f32.mrf.mxu0
    %v482 = vadd.f32 0.0, %v481
    %483 = vdwg.mxu0
    %v484 = vadd.f32 %v291, %v445
    %v485 = vadd.f32 %v292, %v447
    %v486 = vadd.f32 %v293, %v450
    %v487 = vadd.f32 %v294, %v452
    %v488 = vadd.f32 %v295, %v455
    %v489 = vadd.f32 %v296, %v457
    %v490 = vadd.f32 %v297, %v460
    %v491 = vadd.f32 %v298, %v462
    %v492 = vadd.f32 %v299, %v465
    %v493 = vadd.f32 %v300, %v467
    %v494 = vadd.f32 %v301, %v470
    %v495 = vadd.f32 %v302, %v472
    %v496 = vadd.f32 %v303, %v475
    %v497 = vadd.f32 %v304, %v477
    %v498 = vadd.f32 %v305, %v480
    %v499 = vadd.f32 %v306, %v482
    %500 = vst [vmem:[#allocation2] sm:$0xff] %v484
    %501 = vst [vmem:[#allocation2 + $0x8] sm:$0xff] %v485
    %502 = vst [vmem:[#allocation2 + $0x10] sm:$0xff] %v486
    %503 = vst [vmem:[#allocation2 + $0x18] sm:$0xff] %v487
    %504 = vst [vmem:[#allocation2 + $0x20] sm:$0xff] %v488
    %505 = vst [vmem:[#allocation2 + $0x28] sm:$0xff] %v489
    %506 = vst [vmem:[#allocation2 + $0x30] sm:$0xff] %v490
    %507 = vst [vmem:[#allocation2 + $0x38] sm:$0xff] %v491
    %508 = vst [vmem:[#allocation2 + $0x40] sm:$0xff] %v492
    %509 = vst [vmem:[#allocation2 + $0x48] sm:$0xff] %v493
    %510 = vst [vmem:[#allocation2 + $0x50] sm:$0xff] %v494
    %511 = vst [vmem:[#allocation2 + $0x58] sm:$0xff] %v495
    %512 = vst [vmem:[#allocation2 + $0x60] sm:$0xff] %v496
    %513 = vst [vmem:[#allocation2 + $0x68] sm:$0xff] %v497
    %514 = vst [vmem:[#allocation2 + $0x70] sm:$0xff] %v498
    %515 = vst [vmem:[#allocation2 + $0x78] sm:$0xff] %v499
    // Predicated region
    $region46: #{tpu_custom_call.1} parent=1 // pred_check
      %p516 = pneg %p74
    $region47: #{tpu_custom_call.1} parent=1 // pred_check_branch
      %518 = sbr.rel (%p516) target = $region49
    $region48: #{tpu_custom_call.1} parent=1 // pred_region
      %v519 = vld [vmem:[#allocation2] sm:$0xff]
      %v520 = vld [vmem:[#allocation2 + $0x8] sm:$0xff]
      %v521 = vld [vmem:[#allocation2 + $0x10] sm:$0xff]
      %v522 = vld [vmem:[#allocation2 + $0x18] sm:$0xff]
      %v523 = vld [vmem:[#allocation2 + $0x20] sm:$0xff]
      %v524 = vld [vmem:[#allocation2 + $0x28] sm:$0xff]
      %v525 = vld [vmem:[#allocation2 + $0x30] sm:$0xff]
      %v526 = vld [vmem:[#allocation2 + $0x38] sm:$0xff]
      %v527 = vld [vmem:[#allocation2 + $0x40] sm:$0xff]
      %v528 = vld [vmem:[#allocation2 + $0x48] sm:$0xff]
      %v529 = vld [vmem:[#allocation2 + $0x50] sm:$0xff]
      %v530 = vld [vmem:[#allocation2 + $0x58] sm:$0xff]
      %v531 = vld [vmem:[#allocation2 + $0x60] sm:$0xff]
      %v532 = vld [vmem:[#allocation2 + $0x68] sm:$0xff]
      %v533 = vld [vmem:[#allocation2 + $0x70] sm:$0xff]
      %v534 = vld [vmem:[#allocation2 + $0x78] sm:$0xff]
      %v535 = vld [vmem:[%s3] sm:$0xff]
      %v536 = vld [vmem:[%s3 + $0x8] sm:$0xff]
      %v537 = vld [vmem:[%s3 + $0x10] sm:$0xff]
      %v538 = vld [vmem:[%s3 + $0x18] sm:$0xff]
      %v539 = vld [vmem:[%s3 + $0x20] sm:$0xff]
      %v540 = vld [vmem:[%s3 + $0x28] sm:$0xff]
      %v541 = vld [vmem:[%s3 + $0x30] sm:$0xff]
      %v542 = vld [vmem:[%s3 + $0x38] sm:$0xff]
      %v543 = vld [vmem:[%s3 + $0x40] sm:$0xff]
      %v544 = vld [vmem:[%s3 + $0x48] sm:$0xff]
      %v545 = vld [vmem:[%s3 + $0x50] sm:$0xff]
      %v546 = vld [vmem:[%s3 + $0x58] sm:$0xff]
      %v547 = vld [vmem:[%s3 + $0x60] sm:$0xff]
      %v548 = vld [vmem:[%s3 + $0x68] sm:$0xff]
      %v549 = vld [vmem:[%s3 + $0x70] sm:$0xff]
      %v550 = vld [vmem:[%s3 + $0x78] sm:$0xff]
      %552 = vset.pattern.permute.xlu0 0
      %553 = vperm.xlu0 %552, %v535
      %v554 = vpop.permute.xlu0 %553
      %557 = vset.pattern.permute.xlu0 0
      %558 = vperm.xlu0 %557, %v536
      %v559 = vpop.permute.xlu0 %558
      %562 = vset.pattern.permute.xlu0 0
      %563 = vperm.xlu0 %562, %v537
      %v564 = vpop.permute.xlu0 %563
      %567 = vset.pattern.permute.xlu0 0
      %568 = vperm.xlu0 %567, %v538
      %v569 = vpop.permute.xlu0 %568
      %572 = vset.pattern.permute.xlu0 0
      %573 = vperm.xlu0 %572, %v539
      %v574 = vpop.permute.xlu0 %573
      %577 = vset.pattern.permute.xlu0 0
      %578 = vperm.xlu0 %577, %v540
      %v579 = vpop.permute.xlu0 %578
      %582 = vset.pattern.permute.xlu0 0
      %583 = vperm.xlu0 %582, %v541
      %v584 = vpop.permute.xlu0 %583
      %587 = vset.pattern.permute.xlu0 0
      %588 = vperm.xlu0 %587, %v542
      %v589 = vpop.permute.xlu0 %588
      %592 = vset.pattern.permute.xlu0 0
      %593 = vperm.xlu0 %592, %v543
      %v594 = vpop.permute.xlu0 %593
      %597 = vset.pattern.permute.xlu0 0
      %598 = vperm.xlu0 %597, %v544
      %v599 = vpop.permute.xlu0 %598
      %602 = vset.pattern.permute.xlu0 0
      %603 = vperm.xlu0 %602, %v545
      %v604 = vpop.permute.xlu0 %603
      %607 = vset.pattern.permute.xlu0 0
      %608 = vperm.xlu0 %607, %v546
      %v609 = vpop.permute.xlu0 %608
      %612 = vset.pattern.permute.xlu0 0
      %613 = vperm.xlu0 %612, %v547
      %v614 = vpop.permute.xlu0 %613
      %617 = vset.pattern.permute.xlu0 0
      %618 = vperm.xlu0 %617, %v548
      %v619 = vpop.permute.xlu0 %618
      %622 = vset.pattern.permute.xlu0 0
      %623 = vperm.xlu0 %622, %v549
      %v624 = vpop.permute.xlu0 %623
      %627 = vset.pattern.permute.xlu0 0
      %628 = vperm.xlu0 %627, %v550
      %v629 = vpop.permute.xlu0 %628
      %v631 = vmul.f32 %v519, %v554
      %v632 = vmul.f32 %v520, %v559
      %v633 = vmul.f32 %v521, %v564
      %v634 = vmul.f32 %v522, %v569
      %v635 = vmul.f32 %v523, %v574
      %v636 = vmul.f32 %v524, %v579
      %v637 = vmul.f32 %v525, %v584
      %v638 = vmul.f32 %v526, %v589
      %v639 = vmul.f32 %v527, %v594
      %v640 = vmul.f32 %v528, %v599
      %v641 = vmul.f32 %v529, %v604
      %v642 = vmul.f32 %v530, %v609
      %v643 = vmul.f32 %v531, %v614
      %v644 = vmul.f32 %v532, %v619
      %v645 = vmul.f32 %v533, %v624
      %v646 = vmul.f32 %v534, %v629
      %v647 = vpack.c.bf16 %v632, %v631
      %v648 = vpack.c.bf16 %v634, %v633
      %v649 = vpack.c.bf16 %v636, %v635
      %v650 = vpack.c.bf16 %v638, %v637
      %v651 = vpack.c.bf16 %v640, %v639
      %v652 = vpack.c.bf16 %v642, %v641
      %v653 = vpack.c.bf16 %v644, %v643
      %v654 = vpack.c.bf16 %v646, %v645
      %v655 = vld [vmem:[#allocation7] sm:$0xf]
      %v656 = vld [vmem:[#allocation7 + $0x4] sm:$0xf]
      %v657 = vld [vmem:[#allocation7 + $0x8] sm:$0xf]
      %v658 = vld [vmem:[#allocation7 + $0xc] sm:$0xf]
      %v659 = vld [vmem:[#allocation7 + $0x10] sm:$0xf]
      %v660 = vld [vmem:[#allocation7 + $0x14] sm:$0xf]
      %v661 = vld [vmem:[#allocation7 + $0x18] sm:$0xf]
      %v662 = vld [vmem:[#allocation7 + $0x1c] sm:$0xf]
      %v663 = vld [vmem:[#allocation7 + $0x20] sm:$0xf]
      %v664 = vld [vmem:[#allocation7 + $0x24] sm:$0xf]
      %v665 = vld [vmem:[#allocation7 + $0x28] sm:$0xf]
      %v666 = vld [vmem:[#allocation7 + $0x2c] sm:$0xf]
      %v667 = vld [vmem:[#allocation7 + $0x30] sm:$0xf]
      %v668 = vld [vmem:[#allocation7 + $0x34] sm:$0xf]
      %v669 = vld [vmem:[#allocation7 + $0x38] sm:$0xf]
      %v670 = vld [vmem:[#allocation7 + $0x3c] sm:$0xf]
      %v671 = vld [vmem:[#allocation3] sm:$0xff]
      %v672 = vld [vmem:[#allocation3 + $0x8] sm:$0xff]
      %v673 = vld [vmem:[#allocation3 + $0x10] sm:$0xff]
      %v674 = vld [vmem:[#allocation3 + $0x18] sm:$0xff]
      %v675 = vld [vmem:[#allocation3 + $0x20] sm:$0xff]
      %v676 = vld [vmem:[#allocation3 + $0x28] sm:$0xff]
      %v677 = vld [vmem:[#allocation3 + $0x30] sm:$0xff]
      %v678 = vld [vmem:[#allocation3 + $0x38] sm:$0xff]
      %v679 = vld [vmem:[#allocation3 + $0x40] sm:$0xff]
      %v680 = vld [vmem:[#allocation3 + $0x48] sm:$0xff]
      %v681 = vld [vmem:[#allocation3 + $0x50] sm:$0xff]
      %v682 = vld [vmem:[#allocation3 + $0x58] sm:$0xff]
      %v683 = vld [vmem:[#allocation3 + $0x60] sm:$0xff]
      %v684 = vld [vmem:[#allocation3 + $0x68] sm:$0xff]
      %v685 = vld [vmem:[#allocation3 + $0x70] sm:$0xff]
      %v686 = vld [vmem:[#allocation3 + $0x78] sm:$0xff]
      %v703 = vunpack.c.l.b16 %v655
      %v704 = vunpack.c.l.b16 %v656
      %v705 = vunpack.c.l.b16 %v657
      %v706 = vunpack.c.l.b16 %v658
      %v707 = vunpack.c.l.b16 %v659
      %v708 = vunpack.c.l.b16 %v660
      %v709 = vunpack.c.l.b16 %v661
      %v710 = vunpack.c.l.b16 %v662
      %v711 = vunpack.c.l.b16 %v663
      %v712 = vunpack.c.l.b16 %v664
      %v713 = vunpack.c.l.b16 %v665
      %v714 = vunpack.c.l.b16 %v666
      %v715 = vunpack.c.l.b16 %v667
      %v716 = vunpack.c.l.b16 %v668
      %v717 = vunpack.c.l.b16 %v669
      %v718 = vunpack.c.l.b16 %v670
      %v719 = vpack.c.b16 %v704, %v703
      %v720 = vpack.c.b16 %v706, %v705
      %v721 = vpack.c.b16 %v708, %v707
      %v722 = vpack.c.b16 %v710, %v709
      %v723 = vpack.c.b16 %v712, %v711
      %v724 = vpack.c.b16 %v714, %v713
      %v725 = vpack.c.b16 %v716, %v715
      %v726 = vpack.c.b16 %v718, %v717
      %735 = vmatpush.bf16.msra.mxu0 %v726
      %736 = vmatpush.bf16.msra.mxu0 %v725
      %737 = vmatpush.bf16.msra.mxu0 %v724
      %738 = vmatpush.bf16.msra.mxu0 %v723
      %739 = vmatpush.bf16.msra.mxu0 %v722
      %740 = vmatpush.bf16.msra.mxu0 %v721
      %741 = vmatpush.bf16.msra.mxu0 %v720
      %742 = vmatpush.bf16.msra.mxu0 %v719
      %743 = vmatmul.bf16.gmra.mxu0 %v647
      %v744 = vpop.f32.mrf.mxu0
      %v745 = vadd.f32 %v671, %v744
      %v746 = vpop.f32.mrf.mxu0
      %v747 = vadd.f32 %v672, %v746
      %748 = vmatmul.bf16.gmra.mxu0 %v648
      %v749 = vpop.f32.mrf.mxu0
      %v750 = vadd.f32 %v673, %v749
      %v751 = vpop.f32.mrf.mxu0
      %v752 = vadd.f32 %v674, %v751
      %753 = vmatmul.bf16.gmra.mxu0 %v649
      %v754 = vpop.f32.mrf.mxu0
      %v755 = vadd.f32 %v675, %v754
      %v756 = vpop.f32.mrf.mxu0
      %v757 = vadd.f32 %v676, %v756
      %758 = vmatmul.bf16.gmra.mxu0 %v650
      %v759 = vpop.f32.mrf.mxu0
      %v760 = vadd.f32 %v677, %v759
      %v761 = vpop.f32.mrf.mxu0
      %v762 = vadd.f32 %v678, %v761
      %763 = vmatmul.bf16.gmra.mxu0 %v651
      %v764 = vpop.f32.mrf.mxu0
      %v765 = vadd.f32 %v679, %v764
      %v766 = vpop.f32.mrf.mxu0
      %v767 = vadd.f32 %v680, %v766
      %768 = vmatmul.bf16.gmra.mxu0 %v652
      %v769 = vpop.f32.mrf.mxu0
      %v770 = vadd.f32 %v681, %v769
      %v771 = vpop.f32.mrf.mxu0
      %v772 = vadd.f32 %v682, %v771
      %773 = vmatmul.bf16.gmra.mxu0 %v653
      %v774 = vpop.f32.mrf.mxu0
      %v775 = vadd.f32 %v683, %v774
      %v776 = vpop.f32.mrf.mxu0
      %v777 = vadd.f32 %v684, %v776
      %778 = vmatmul.bf16.gmra.mxu0 %v654
      %v779 = vpop.f32.mrf.mxu0
      %v780 = vadd.f32 %v685, %v779
      %v781 = vpop.f32.mrf.mxu0
      %v782 = vadd.f32 %v686, %v781
      %783 = vdwg.mxu0
      %v784 = vmax.f32 %v745, 0.0
      %v785 = vmax.f32 %v747, 0.0
      %v786 = vmax.f32 %v750, 0.0
      %v787 = vmax.f32 %v752, 0.0
      %v788 = vmax.f32 %v755, 0.0
      %v789 = vmax.f32 %v757, 0.0
      %v790 = vmax.f32 %v760, 0.0
      %v791 = vmax.f32 %v762, 0.0
      %v792 = vmax.f32 %v765, 0.0
      %v793 = vmax.f32 %v767, 0.0
      %v794 = vmax.f32 %v770, 0.0
      %v795 = vmax.f32 %v772, 0.0
      %v796 = vmax.f32 %v775, 0.0
      %v797 = vmax.f32 %v777, 0.0
      %v798 = vmax.f32 %v780, 0.0
      %v799 = vmax.f32 %v782, 0.0
      %v800 = vpack.c.bf16 %v784, %v784
      %v801 = vpack.c.bf16 %v785, %v785
      %v802 = vpack.c.bf16 %v786, %v786
      %v803 = vpack.c.bf16 %v787, %v787
      %v804 = vpack.c.bf16 %v788, %v788
      %v805 = vpack.c.bf16 %v789, %v789
      %v806 = vpack.c.bf16 %v790, %v790
      %v807 = vpack.c.bf16 %v791, %v791
      %v808 = vpack.c.bf16 %v792, %v792
      %v809 = vpack.c.bf16 %v793, %v793
      %v810 = vpack.c.bf16 %v794, %v794
      %v811 = vpack.c.bf16 %v795, %v795
      %v812 = vpack.c.bf16 %v796, %v796
      %v813 = vpack.c.bf16 %v797, %v797
      %v814 = vpack.c.bf16 %v798, %v798
      %v815 = vpack.c.bf16 %v799, %v799
      %816 = vst [vmem:[#allocation10] sm:$0xf] %v800
      %817 = vst [vmem:[#allocation10 + $0x4] sm:$0xf] %v801
      %818 = vst [vmem:[#allocation10 + $0x8] sm:$0xf] %v802
      %819 = vst [vmem:[#allocation10 + $0xc] sm:$0xf] %v803
      %820 = vst [vmem:[#allocation10 + $0x10] sm:$0xf] %v804
      %821 = vst [vmem:[#allocation10 + $0x14] sm:$0xf] %v805
      %822 = vst [vmem:[#allocation10 + $0x18] sm:$0xf] %v806
      %823 = vst [vmem:[#allocation10 + $0x1c] sm:$0xf] %v807
      %824 = vst [vmem:[#allocation10 + $0x20] sm:$0xf] %v808
      %825 = vst [vmem:[#allocation10 + $0x24] sm:$0xf] %v809
      %826 = vst [vmem:[#allocation10 + $0x28] sm:$0xf] %v810
      %827 = vst [vmem:[#allocation10 + $0x2c] sm:$0xf] %v811
      %828 = vst [vmem:[#allocation10 + $0x30] sm:$0xf] %v812
      %829 = vst [vmem:[#allocation10 + $0x34] sm:$0xf] %v813
      %830 = vst [vmem:[#allocation10 + $0x38] sm:$0xf] %v814
      %831 = vst [vmem:[#allocation10 + $0x3c] sm:$0xf] %v815
    $region49: #{tpu_custom_call.1} parent=1 // pred_fallthru
      _
    // Predicated region
    $region50: #{tpu_custom_call.1} parent=1 // pred_check
      _
    $region51: #{tpu_custom_call.1} parent=1 // pred_check_branch
      %833 = sbr.rel (0) target = $region53
    $region52: #{tpu_custom_call.1} parent=1 // pred_region
      %835 = vsyncadd [#allocation6], 0
      %s836 = sshll.u32 [#allocation10], 4
      %s837 = int_to_ptr.vmem [resolvable:$true] %s836
      %s838 = sshll.u32 %s7, 4
      %s839 = int_to_ptr.hbm [resolvable:$true] %s838
      %844 = dma.vmem_to_hbm [thread:$0]  %s837, 1024, %s839, [#allocation6], 64, 64, 4
    $region53: #{tpu_custom_call.1} parent=1 // pred_fallthru
      _
    // Predicated region
    $region54: #{tpu_custom_call.1} parent=1 // pred_check
      _
    $region55: #{tpu_custom_call.1} parent=1 // pred_check_branch
      %846 = sbr.rel (0) target = $region57
    $region56: #{tpu_custom_call.1} parent=1 // pred_region
      %848 = dma.done [#allocation6], 1024
    $region57: #{tpu_custom_call.1} parent=1 // pred_fallthru
      _
    %849 = vsyncpa [#allocation5], 1
    %850 = vsyncpa [#allocation8], 1
    %851 = vsyncpa [#allocation6], 1

</llo_original>
